<compile_context>
chip_gen: v5e
topology: v5e:2x2
jax: 0.10.0
libtpu: 0.0.40
codegen_flags: <defaults>
</compile_context>

<pallas_src>
import jax
import jax.numpy as jnp
from jax.experimental import pallas as pl
from jax.experimental.pallas import tpu as pltpu


def _make_softmax_body_kernel(T: float, num_actions: int):
    Tf = float(T)

    def kernel(x_ref, u_ref, tri_ref, act_ref):
        # ---- temperature softmax, kept unnormalized (numerically stable) ----
        x = x_ref[...].astype(jnp.float32) * Tf                      # (TB, A)
        m = jnp.max(x, axis=-1, keepdims=True)                       # (TB, 1)
        e = jnp.exp(x - m)                                           # (TB, A)  unnormalized probs
        s = jnp.sum(e, axis=-1, keepdims=True)                       # (TB, 1)  normalizer

        # ---- running (unnormalized) CDF via one MXU pass against the hoisted tri ----
        cdf = jnp.dot(e, tri_ref[...], preferred_element_type=jnp.float32)  # (TB, A)

        # ---- inverse-CDF sampling: action = #{k : cdf[k] < u * s}  (== cdf/s < u) ----
        thresh = u_ref[...] * s                                      # (TB, 1)
        act = jnp.sum((cdf < thresh).astype(jnp.int32), axis=-1, keepdims=True)
        act_ref[...] = jnp.minimum(act, num_actions - 1)             # guard u ~= 1.0 edge

    return kernel


def _round_up(x: int, m: int) -> int:
    return ((x + m - 1) // m) * m


def softmax_body(outputs: jax.Array, u: jax.Array, T: float, *, tb: int = 1024) -> jax.Array:
    """outputs: (B, A) float32 brain logits; u: (B, 1) uniforms in [0,1). Returns (B, 1) int32."""
    B, A = outputs.shape

    # Batch tile: multiple of 8 (f32 sublane), capped by the (padded) batch. 1024 rows keeps
    # double-buffered VMEM per input well under the v7x 32 MiB scoped default at any sane A.
    TB = min(int(tb), _round_up(B, 8))
    Bp = _round_up(B, TB)
    if Bp != B:
        outputs = jnp.pad(outputs, ((0, Bp - B), (0, 0)))
        u = jnp.pad(u, ((0, Bp - B), (0, 0)))

    # Upper-triangular (incl. diag) cumsum matrix, built once on the host: tri[j, k] = j <= k.
    idx = jnp.arange(A)
    tri = (idx[:, None] <= idx[None, :]).astype(jnp.float32)          # (A, A)

    kernel = _make_softmax_body_kernel(T, A)
    actions = pl.pallas_call(
        kernel,
        out_shape=jax.ShapeDtypeStruct((Bp, 1), jnp.int32),
        grid=(Bp // TB,),
        in_specs=[
            pl.BlockSpec((TB, A), lambda i: (i, 0)),    # logits: streamed per batch tile
            pl.BlockSpec((TB, 1), lambda i: (i, 0)),    # uniforms: streamed per batch tile
            pl.BlockSpec((A, A), lambda i: (0, 0)),     # tri: constant block, fetched once
        ],
        out_specs=pl.BlockSpec((TB, 1), lambda i: (i, 0)),
        compiler_params=pltpu.CompilerParams(
            dimension_semantics=("parallel",),          # shard batch tiles across TCs (v7x)
        ),
    )(outputs, u, tri)

    return actions[:B]


if __name__ == "__main__":
    T = 1.0                      # SoftmaxBody temperature (doom agent uses T=1.0)
    B, A = 8, 16                 # small: batch=8, num_actions=16

    key = jax.random.PRNGKey(0)
    k_logits, k_u = jax.random.split(key)
    outputs = jax.random.normal(k_logits, (B, A), dtype=jnp.float32)   # brain output signals
    u = jax.random.uniform(k_u, (B, 1), dtype=jnp.float32)             # per-row uniforms

    actions = softmax_body(outputs, u, T)
    actions = jax.block_until_ready(actions)

    # sanity: one action index per row, within [0, A)
    assert actions.shape == (B, 1)
    assert actions.dtype == jnp.int32
    assert bool(jnp.all(actions >= 0)) and bool(jnp.all(actions < A))

    # cross-check against a pure-JAX reference of the same inverse-CDF sampler
    ref_p = jax.nn.softmax(outputs * T, axis=-1)
    ref_cdf = jnp.cumsum(ref_p, axis=-1)
    ref_act = jnp.minimum(jnp.sum((ref_cdf < u).astype(jnp.int32), axis=-1, keepdims=True), A - 1)
    assert bool(jnp.all(actions == ref_act))

    print("KERNEL_OK")
</pallas_src>

<mosaic_0001>
module attributes {stable_mosaic.version = 11 : i64} {
  func.func @kernel(%arg0: i32, %arg1: memref<8x16xf32, #tpu.memory_space<vmem>>, %arg2: memref<8x1xf32, #tpu.memory_space<vmem>>, %arg3: memref<16x16xf32, #tpu.memory_space<vmem>>, %arg4: memref<8x1xi32, #tpu.memory_space<vmem>>) attributes {dimension_semantics = [#tpu.dimension_semantics<parallel>], iteration_bounds = array<i64: 1>, scalar_prefetch = 0 : i64, scratch_operands = 0 : i64, tpu.core_type = #tpu.core_type<tc>, window_params = [{transform_indices = @transform_0, window_bounds = array<i64: 8, 16>}, {transform_indices = @transform_1, window_bounds = array<i64: 8, 1>}, {pipeline_mode = #tpu.pipeline_mode<synchronous>, transform_indices = @transform_2, window_bounds = array<i64: 16, 16>}, {transform_indices = @transform_3, window_bounds = array<i64: 8, 1>}]} {
    %c0 = arith.constant 0 : index
    %c0_0 = arith.constant 0 : index
    %0 = vector.load %arg1[%c0, %c0_0] : memref<8x16xf32, #tpu.memory_space<vmem>>, vector<8x16xf32>
    %cst = arith.constant 1.000000e+00 : f32
    %1 = vector.broadcast %cst : f32 to vector<8x16xf32>
    %2 = arith.mulf %0, %1 : vector<8x16xf32>
    %cst_1 = arith.constant dense<0xFF800000> : vector<8xf32>
    %3 = vector.multi_reduction <maximumf>, %2, %cst_1 [1] : vector<8x16xf32> to vector<8xf32>
    %4 = vector.shape_cast %3 : vector<8xf32> to vector<8x1xf32>
    %5 = vector.broadcast %4 : vector<8x1xf32> to vector<8x16xf32>
    %6 = arith.subf %2, %5 : vector<8x16xf32>
    %7 = math.exp %6 : vector<8x16xf32>
    %cst_2 = arith.constant dense<0.000000e+00> : vector<8xf32>
    %8 = vector.multi_reduction <add>, %7, %cst_2 [1] : vector<8x16xf32> to vector<8xf32>
    %9 = vector.shape_cast %8 : vector<8xf32> to vector<8x1xf32>
    %c0_3 = arith.constant 0 : index
    %c0_4 = arith.constant 0 : index
    %10 = vector.load %arg3[%c0_3, %c0_4] : memref<16x16xf32, #tpu.memory_space<vmem>>, vector<16x16xf32>
    %cst_5 = arith.constant dense<0.000000e+00> : vector<8x16xf32>
    %11 = tpu.matmul %7, %10, %cst_5 {dimension_numbers = #tpu.dot_dimension_numbers<[1], [0], [0], [1], [0, 0, 1, 1], [], []>} : vector<8x16xf32>, vector<16x16xf32>, vector<8x16xf32> -> vector<8x16xf32>
    %c0_6 = arith.constant 0 : index
    %c0_7 = arith.constant 0 : index
    %12 = vector.load %arg2[%c0_6, %c0_7] : memref<8x1xf32, #tpu.memory_space<vmem>>, vector<8x1xf32>
    %13 = arith.mulf %12, %9 : vector<8x1xf32>
    %14 = vector.broadcast %13 : vector<8x1xf32> to vector<8x16xf32>
    %15 = arith.cmpf olt, %11, %14 : vector<8x16xf32>
    %16 = arith.extui %15 : vector<8x16xi1> to vector<8x16xi32>
    %cst_8 = arith.constant dense<0> : vector<8xi32>
    %17 = vector.multi_reduction <add>, %16, %cst_8 [1] : vector<8x16xi32> to vector<8xi32>
    %18 = vector.shape_cast %17 : vector<8xi32> to vector<8x1xi32>
    %c15_i32 = arith.constant 15 : i32
    %19 = vector.broadcast %c15_i32 : i32 to vector<8x1xi32>
    %20 = arith.minsi %18, %19 : vector<8x1xi32>
    %c0_9 = arith.constant 0 : index
    %c0_10 = arith.constant 0 : index
    %21 = vector.load %arg4[%c0_9, %c0_10] : memref<8x1xi32, #tpu.memory_space<vmem>>, vector<8x1xi32>
    tpu.vector_store %arg4[%c0_9, %c0_10], %20 {strides = array<i32>} : memref<8x1xi32, #tpu.memory_space<vmem>>, vector<8x1xi32>,
    return
  }
  func.func @transform_0(%arg0: i32) -> (i32, i32) {
    %c0_i32 = arith.constant 0 : i32
    %c0_i32_0 = arith.constant 0 : i32
    return %arg0, %c0_i32 : i32, i32
  }
  func.func @transform_1(%arg0: i32) -> (i32, i32) {
    %c0_i32 = arith.constant 0 : i32
    %c0_i32_0 = arith.constant 0 : i32
    return %arg0, %c0_i32 : i32, i32
  }
  func.func @transform_2(%arg0: i32) -> (i32, i32) {
    %c0_i32 = arith.constant 0 : i32
    %c0_i32_0 = arith.constant 0 : i32
    %c0_i32_1 = arith.constant 0 : i32
    return %c0_i32, %c0_i32_0 : i32, i32
  }
  func.func @transform_3(%arg0: i32) -> (i32, i32) {
    %c0_i32 = arith.constant 0 : i32
    %c0_i32_0 = arith.constant 0 : i32
    return %arg0, %c0_i32 : i32, i32
  }
}

</mosaic_0001>

<llo_original>
// kernel: tpu_custom_call.1
$region0: #{tpu_custom_call.1}
  #allocation0 [shape = 'u32[]', space=smem, size = 0x4, offset = 0x4, fixed_abs, tag = 'smem constant byte address 0x4 - core index']
  #allocation1 [shape = 'u32[72,128]{1,0:T(1,128)}', space=vmem, size = 0x9000, scoped, tag = 'internal scratch']
  %s0 = inlined_call_operand.vmem [shape: f32[8,16], index: 0, kind: input, shape index: {}]
  %s1 = inlined_call_operand.vmem [shape: f32[8,1], index: 1, kind: input, shape index: {}]
  %s2 = inlined_call_operand.hbm [shape: f32[16,16], index: 2, kind: input, shape index: {}]
  %s3 = inlined_call_operand.vmem [shape: s32[8,1], index: 3, kind: output, shape index: {}]
  %s4 = sld [smem:[#allocation0]]
  $region26: #{tpu_custom_call.1} parent=0
    _
  %s6 = ssub.s32 1, %s4
  %s7 = scalar_select 0, %s6, %s4
  $region1: #{tpu_custom_call.1} parent=0
    #allocation2 [shape = 'u8[8192]{0}', space=vmem, size = 0x2000, scoped, tag = 'input window, operand 2, single buffered']
    #allocation3 [shape = 's32[1]{0}', space=sflag, size = 0x4, scoped, tag = 'scoped memory for tpu_custom_call.1']
    %8 = vsyncpa [#allocation3], 0
    // Predicated region
    $region2: #{tpu_custom_call.1} parent=1 // pred_check
      _
    $region3: #{tpu_custom_call.1} parent=1 // pred_check_branch
      %10 = sbr.rel (0) target = $region5
    $region4: #{tpu_custom_call.1} parent=1 // pred_region
      _
    $region5: #{tpu_custom_call.1} parent=1 // pred_fallthru
      _
    // Predicated region
    $region6: #{tpu_custom_call.1} parent=1 // pred_check
      _
    $region7: #{tpu_custom_call.1} parent=1 // pred_check_branch
      %12 = sbr.rel (0) target = $region9
    $region8: #{tpu_custom_call.1} parent=1 // pred_region
      _
    $region9: #{tpu_custom_call.1} parent=1 // pred_fallthru
      _
    // Predicated region
    $region10: #{tpu_custom_call.1} parent=1 // pred_check
      _
    $region11: #{tpu_custom_call.1} parent=1 // pred_check_branch
      %14 = sbr.rel (0) target = $region13
    $region12: #{tpu_custom_call.1} parent=1 // pred_region
      %16 = vsyncadd [#allocation3], 0
      %s17 = sshll.u32 %s2, 4
      %s18 = int_to_ptr.hbm [resolvable:$true] %s17
      %s19 = sshll.u32 [#allocation2], 4
      %s20 = int_to_ptr.vmem [resolvable:$true] %s19
      %25 = dma.hbm_to_vmem [thread:$0]  %s18, 256, %s20, [#allocation3], 128, 128, 8
    $region13: #{tpu_custom_call.1} parent=1 // pred_fallthru
      _
    // Predicated region
    $region14: #{tpu_custom_call.1} parent=1 // pred_check
      _
    $region15: #{tpu_custom_call.1} parent=1 // pred_check_branch
      %27 = sbr.rel (0) target = $region17
    $region16: #{tpu_custom_call.1} parent=1 // pred_region
      %29 = dma.done [#allocation3], 256
    $region17: #{tpu_custom_call.1} parent=1 // pred_fallthru
      _
    %v30 = vld [vmem:[%s0] sm:$0xff]
    %vm31 = vcmask 130048
    %v32 = vsel %vm31, %v30, -inf
    %33 = vmax.xlane.f32.xlu0 %v32
    %v34 = vpop.xlane.xlu0 %33
    %v35 = vsub.f32 %v30, %v34
    %v36 = vmul.f32 %v35, 1.442695
    %v37 = vpow.pop %v36
    %v38 = vsel %vm31, %v37, 0.0
    %39 = vadd.xlane.f32.xlu0 %v38
    %v40 = vpop.xlane.xlu0 %39
    %v41 = vld [vmem:[#allocation2] sm:$0xff]
    %v42 = vld [vmem:[#allocation2 + $0x8] sm:$0xff]
    %v44 = vsel %vm31, %v37, 0
    %46 = vmatpush.msra.mxu0 0.0
    %47 = vmatpush.msra.mxu0 0.0
    %48 = vmatpush.msra.mxu0 0.0
    %49 = vmatpush.msra.mxu0 0.0
    %50 = vmatpush.msra.mxu0 0.0
    %51 = vmatpush.msra.mxu0 0.0
    %52 = vmatpush.msra.mxu0 0.0
    %53 = vmatpush.msra.mxu0 0.0
    %54 = vmatpush.msra.mxu0 0.0
    %55 = vmatpush.msra.mxu0 0.0
    %56 = vmatpush.msra.mxu0 0.0
    %57 = vmatpush.msra.mxu0 0.0
    %58 = vmatpush.msra.mxu0 0.0
    %59 = vmatpush.msra.mxu0 0.0
    %60 = vmatpush.msra.mxu0 %v42
    %61 = vmatpush.msra.mxu0 %v41
    %62 = vmatmul.f32.gmra.mxu0 %v44
    %v63 = vpop.f32.mrf.mxu0
    %v64 = vadd.f32 0.0, %v63
    %65 = vdwg.mxu0
    %v66 = vld [vmem:[%s1] sm:$0xff]
    %v67 = vmul.f32 %v66, %v40
    %69 = vset.pattern.permute.xlu0 0
    %70 = vperm.xlu0 %69, %v67
    %v71 = vpop.permute.xlu0 %70
    %vm73 = vcmp.lt.f32.partialorder %v64, %v71
    %v74 = vsel %vm73, 1, 0
    %v75 = vsel %vm31, %v74, 0
    %v76 = vand.u32 %v75, 65535
    %v77 = vshrl.u32 %v75, 16
    %v78 = vcvt.s32.f32 %v76
    %v79 = vcvt.s32.f32 %v77
    %80 = vadd.xlane.f32.xlu0 %v78
    %v81 = vpop.xlane.xlu0 %80
    %82 = vadd.xlane.f32.xlu0 %v79
    %v83 = vpop.xlane.xlu0 %82
    %v84 = vcvt.f32.s32 %v81
    %v85 = vcvt.f32.s32 %v83
    %v86 = vshll.u32 %v85, 16
    %v87 = vadd.s32 %v86, %v84
    %vm88 = vcmp.lt.s32.totalorder %v87, 15
    %v89 = vsel %vm88, %v87, 15
    %vm90 = vcmask 7168
    %91 = vst.msk [vmem:[%s3] sm:$0xff] %vm90, %v89
    // Predicated region
    $region18: #{tpu_custom_call.1} parent=1 // pred_check
      _
    $region19: #{tpu_custom_call.1} parent=1 // pred_check_branch
      %93 = sbr.rel (0) target = $region21
    $region20: #{tpu_custom_call.1} parent=1 // pred_region
      _
    $region21: #{tpu_custom_call.1} parent=1 // pred_fallthru
      _
    // Predicated region
    $region22: #{tpu_custom_call.1} parent=1 // pred_check
      _
    $region23: #{tpu_custom_call.1} parent=1 // pred_check_branch
      %95 = sbr.rel (0) target = $region25
    $region24: #{tpu_custom_call.1} parent=1 // pred_region
      _
    $region25: #{tpu_custom_call.1} parent=1 // pred_fallthru
      _
    %96 = vsyncpa [#allocation3], 1

</llo_original>
